<compile_context>
chip_gen: v7x
topology: tpu7x:2x2x1
jax: 0.10.0
libtpu: 0.0.40
codegen_flags: <defaults>
</compile_context>

<pallas_src>
import functools

import jax
import jax.numpy as jnp
from jax.experimental import pallas as pl
from jax.experimental.pallas import tpu as pltpu


# --------------------------------------------------------------------------------------
# Packed parameter slabs.  Every entry starts on an aligned row boundary (16 rows for the
# bf16 slab, 8 rows for the f32 slab) so static in-kernel slices never straddle a tile edge.
# --------------------------------------------------------------------------------------
def _round_up(n, m):
    return ((n + m - 1) // m) * m


def _make_layout(entries, align):
    layout, row = {}, 0
    for name, nrows in entries:
        layout[name] = row
        row = _round_up(row + nrows, align)
    return layout, max(row, align)


def _pack_slab(arrays, layout, total_rows, dtype):
    slab = jnp.zeros((total_rows, 128), dtype)
    for name, r in layout.items():
        arr = jnp.asarray(arrays[name], jnp.float32)
        slab = slab.at[r:r + arr.shape[0], 0:arr.shape[1]].set(arr.astype(dtype))
    return slab


# --------------------------------------------------------------------------------------
# Pallas kernel: whole forward for one split (B_blk graph-batches) per grid step.
# --------------------------------------------------------------------------------------
def _gcn_classifier_kernel(a_ref, x_ref, p_ref, wb_ref, wf_ref, out_ref, *,
                           wb_layout, wf_layout, cin, hid):
    f32, bf16 = jnp.float32, jnp.bfloat16
    neg_slope = jnp.float32(0.01)                      # F.leaky_relu default

    def lrelu(v):
        return jnp.where(v > 0, v, neg_slope * v)

    def wmat(name, rows, cols):                        # bf16 matmul weight
        r = wb_layout[name]
        return wb_ref[r:r + rows, 0:cols]

    def frow(name, rows, cols):                        # f32 bias / linear params
        r = wf_layout[name]
        return wf_ref[r:r + rows, 0:cols]

    a = a_ref[...]                                     # [R, R]   bf16 block-diag normalized adj
    x = x_ref[...]                                     # [R, cin] bf16 node features (R = Bblk*N)

    # ---- layer 1: leaky_relu((A @ x) @ W1 + b1)   (cin < hid -> cheaper contraction order)
    ax = jnp.dot(a, x, preferred_element_type=f32)                                # [R, cin]
    h = jnp.dot(ax.astype(bf16), wmat("w1", cin, hid), preferred_element_type=f32)
    h = lrelu(h + frow("b1", 1, hid))                                             # [R, hid]

    # ---- layers 2-3: leaky_relu(A @ (h @ Wk) + bk)   (Cout < Cin -> keep this order)
    def gcn_layer(hin, wname, bname, c_in, c_out):
        hw = jnp.dot(hin.astype(bf16), wmat(wname, c_in, c_out),
                     preferred_element_type=f32)                                  # [R, c_out]
        agg = jnp.dot(a, hw.astype(bf16), preferred_element_type=f32)
        return lrelu(agg + frow(bname, 1, c_out))

    h = gcn_layer(h, "w2", "b2", hid, 4)                                          # [R, 4]
    h = gcn_layer(h, "w3", "b3", 4, 2)                                            # [R, 2]

    # ---- layer 4 (2 -> 1): feature transform on the VPU (no 1-lane MXU matmul for h @ W4)
    w4t = frow("w4t", 1, 2)                                                       # [1, 2]
    hw4 = h[:, 0:1] * w4t[0:1, 0:1] + h[:, 1:2] * w4t[0:1, 1:2]                   # [R, 1]
    h = lrelu(jnp.dot(a, hw4.astype(bf16), preferred_element_type=f32)
              + frow("b4", 1, 1))                                                 # [R, 1]

    # ---- per-graph mean pooling: block-diag P [Bblk*G, R] @ h [R, 1]
    pooled = jnp.dot(p_ref[...], h.astype(bf16), preferred_element_type=f32)      # [Bblk*G, 1]

    # ---- Linear(1, out): lane-dense — wl/bl are full 128-lane rows (zeros past out_channels)
    logits = pooled * frow("wl", 1, 128) + frow("bl", 1, 128)                     # [Bblk*G, 128]

    # ---- numerically-stable sigmoid (EUP exp + approx reciprocal), clamped to <= 1.0
    z = jnp.exp(-jnp.abs(logits))
    inv = pl.reciprocal(1.0 + z, approx=True)
    out_ref[...] = jnp.minimum(jnp.where(logits >= 0, inv, z * inv), 1.0)


# --------------------------------------------------------------------------------------
# Wrapper: one pallas_call over all B graph-batches (shared adjacency / pool matrix).
# --------------------------------------------------------------------------------------
def gcn_classifier_forward(a_hat, x_b, pool, params, *,
                           in_channels, hidden_channels, out_channels, num_splits=1):
    """a_hat: [N,N], x_b: [B,N,Cin], pool: [G,N]  ->  [B,G,out_channels] (f32)."""
    B, N, _ = x_b.shape
    G = pool.shape[0]
    assert B % num_splits == 0, "num_splits must divide the number of graph-batches"
    B_blk = B // num_splits
    R = B_blk * N
    assert num_splits == 1 or (R % 8 == 0 and (B_blk * G) % 8 == 0), \
        "per-split row counts must be sublane-aligned"
    assert max(in_channels, hidden_channels, out_channels, 4) <= 128

    # Shared structure: block-diagonal adjacency / pool for one split of B_blk batches.
    eye = jnp.eye(B_blk, dtype=jnp.float32)
    a_blk = jnp.kron(eye, a_hat.astype(jnp.float32)).astype(jnp.bfloat16)   # [R, R]
    p_blk = jnp.kron(eye, pool.astype(jnp.float32)).astype(jnp.bfloat16)    # [B_blk*G, R]
    x_flat = x_b.reshape(B * N, in_channels).astype(jnp.bfloat16)           # [B*N, Cin]

    # Packed parameter slabs: bf16 matmul weights, f32 biases / layer-4 / linear params.
    wb_layout, wb_rows = _make_layout(
        [("w1", in_channels), ("w2", hidden_channels), ("w3", 4)], align=16)
    wf_layout, wf_rows = _make_layout(
        [("b1", 1), ("b2", 1), ("b3", 1), ("b4", 1), ("w4t", 1), ("wl", 1), ("bl", 1)], align=8)
    wb = _pack_slab({k: params[k] for k in ("w1", "w2", "w3")},
                    wb_layout, wb_rows, jnp.bfloat16)
    fparams = {"b1": params["b1"], "b2": params["b2"], "b3": params["b3"], "b4": params["b4"],
               "w4t": params["w4"].T, "wl": params["wl"], "bl": params["bl"]}
    wf = _pack_slab(fparams, wf_layout, wf_rows, jnp.float32)

    kernel = functools.partial(
        _gcn_classifier_kernel, wb_layout=wb_layout, wf_layout=wf_layout,
        cin=in_channels, hid=hidden_channels)

    out_padded = pl.pallas_call(
        kernel,
        out_shape=jax.ShapeDtypeStruct((B * G, 128), jnp.float32),
        grid=(num_splits,),
        in_specs=[
            pl.BlockSpec((R, R), lambda s: (0, 0)),               # block-diag A (shared)
            pl.BlockSpec((R, in_channels), lambda s: (s, 0)),     # node features per split
            pl.BlockSpec((B_blk * G, R), lambda s: (0, 0)),       # block-diag pool (shared)
            pl.BlockSpec((wb_rows, 128), lambda s: (0, 0)),       # bf16 weight slab
            pl.BlockSpec((wf_rows, 128), lambda s: (0, 0)),       # f32 bias/linear slab
        ],
        out_specs=pl.BlockSpec((B_blk * G, 128), lambda s: (s, 0)),   # lane-dense output slab
        compiler_params=pltpu.CompilerParams(
            dimension_semantics=("parallel",)),                   # 2 TCs on v7x when splits>=2
    )(a_blk, x_flat, p_blk, wb, wf)

    return out_padded[:, :out_channels].reshape(B, G, out_channels)


# --------------------------------------------------------------------------------------
# Plain-JAX glue: normalized adjacency, mean-pool matrix, params, pure-JAX reference.
# (edge_index scatter / batch.unique() grouping have no clean Pallas equivalent; they are
#  graph preprocessing, done once here in plain JAX.)
# --------------------------------------------------------------------------------------
def build_gcn_norm_adj(edge_index, num_nodes):
    """Dense D^-1/2 (A + I_missing) D^-1/2, matching PyG gcn_norm (add_remaining_self_loops)."""
    src, dst = edge_index[0], edge_index[1]
    adj = jnp.zeros((num_nodes, num_nodes), jnp.float32).at[dst, src].add(1.0)
    diag = jnp.diagonal(adj)
    adj = adj + jnp.diag(jnp.where(diag > 0, 0.0, 1.0))   # only add MISSING self loops
    deg = jnp.sum(adj, axis=1)
    dinv = jnp.where(deg > 0, 1.0 / jnp.sqrt(deg), 0.0)
    return dinv[:, None] * adj * dinv[None, :]


def build_pool_matrix(batch, num_graphs):
    """P[g, n] = 1/|graph_g| iff batch[n] == g."""
    onehot = (batch[None, :] == jnp.arange(num_graphs)[:, None]).astype(jnp.float32)
    counts = jnp.sum(onehot, axis=1, keepdims=True)
    return onehot / jnp.maximum(counts, 1.0)


def init_params(key, in_channels, hidden_channels, out_channels):
    dims = [(in_channels, hidden_channels), (hidden_channels, 4), (4, 2), (2, 1)]
    params = {}
    for i, (cin, cout) in enumerate(dims, start=1):
        key, k = jax.random.split(key)
        scale = 1.0 / jnp.sqrt(jnp.float32(cin))
        params[f"w{i}"] = (jax.random.uniform(k, (cin, cout), jnp.float32) * 2.0 - 1.0) * scale
        params[f"b{i}"] = jnp.zeros((1, cout), jnp.float32)
    key, k = jax.random.split(key)
    params["wl"] = jax.random.uniform(k, (1, out_channels), jnp.float32) * 2.0 - 1.0
    params["bl"] = jnp.zeros((1, out_channels), jnp.float32)
    return params


def reference_forward(a_hat, x, pool, params):
    def lrelu(v):
        return jnp.where(v > 0, v, 0.01 * v)
    h = lrelu(a_hat @ (x @ params["w1"]) + params["b1"])
    h = lrelu(a_hat @ (h @ params["w2"]) + params["b2"])
    h = lrelu(a_hat @ (h @ params["w3"]) + params["b3"])
    h = lrelu(a_hat @ (h @ params["w4"]) + params["b4"])
    return jax.nn.sigmoid((pool @ h) @ params["wl"] + params["bl"])


# --------------------------------------------------------------------------------------
if __name__ == "__main__":
    key = jax.random.PRNGKey(0)
    in_channels, hidden_channels, out_channels = 4, 32, 1
    num_nodes, num_graphs, num_batches = 16, 2, 8
    nodes_per_graph = num_nodes // num_graphs

    # shared graph structure: two 8-node undirected rings per graph-batch
    edges = []
    for g in range(num_graphs):
        base = g * nodes_per_graph
        for i in range(nodes_per_graph):
            u, v = base + i, base + (i + 1) % nodes_per_graph
            edges += [(u, v), (v, u)]
    edge_index = jnp.array(edges, dtype=jnp.int32).T                     # [2, E]
    batch = jnp.repeat(jnp.arange(num_graphs, dtype=jnp.int32), nodes_per_graph)

    a_hat = build_gcn_norm_adj(edge_index, num_nodes)                    # [N, N]  (shared)
    pool = build_pool_matrix(batch, num_graphs)                          # [G, N]  (shared)

    # many independent graph-batches: same structure, different node features
    key, kx = jax.random.split(key)
    x_b = jax.random.normal(kx, (num_batches, num_nodes, in_channels), jnp.float32)

    params = init_params(key, in_channels, hidden_channels, out_channels)

    fwd = jax.jit(functools.partial(
        gcn_classifier_forward,
        in_channels=in_channels, hidden_channels=hidden_channels,
        out_channels=out_channels, num_splits=2))
    out = jax.block_until_ready(fwd(a_hat, x_b, pool, params))

    assert out.shape == (num_batches, num_graphs, out_channels)
    assert bool(jnp.all(jnp.isfinite(out)))
    assert bool(jnp.all((out >= 0.0) & (out <= 1.0)))

    # pure-JAX f32 reference; bf16 matmuls + approx reciprocal => loose tolerance
    ref = jax.vmap(lambda xx: reference_forward(a_hat, xx, pool, params))(x_b)
    max_diff = float(jnp.max(jnp.abs(out - ref)))
    assert bool(jnp.allclose(out, ref, atol=5e-2, rtol=5e-2)), f"max abs diff {max_diff}"

    print("KERNEL_OK")
</pallas_src>

<mosaic_0001>
module attributes {stable_mosaic.version = 11 : i64} {
  func.func @_gcn_classifier_kernel(%arg0: i32, %arg1: memref<64x64xbf16, #tpu.memory_space<vmem>>, %arg2: memref<64x4xbf16, #tpu.memory_space<vmem>>, %arg3: memref<8x64xbf16, #tpu.memory_space<vmem>>, %arg4: memref<64x128xbf16, #tpu.memory_space<vmem>>, %arg5: memref<56x128xf32, #tpu.memory_space<vmem>>, %arg6: memref<8x128xf32, #tpu.memory_space<vmem>>) attributes {dimension_semantics = [#tpu.dimension_semantics<parallel>], iteration_bounds = array<i64: 2>, scalar_prefetch = 0 : i64, scratch_operands = 0 : i64, tpu.core_type = #tpu.core_type<tc>, window_params = [{pipeline_mode = #tpu.pipeline_mode<synchronous>, transform_indices = @transform_0, window_bounds = array<i64: 64, 64>}, {transform_indices = @transform_1, window_bounds = array<i64: 64, 4>}, {pipeline_mode = #tpu.pipeline_mode<synchronous>, transform_indices = @transform_2, window_bounds = array<i64: 8, 64>}, {pipeline_mode = #tpu.pipeline_mode<synchronous>, transform_indices = @transform_3, window_bounds = array<i64: 64, 128>}, {pipeline_mode = #tpu.pipeline_mode<synchronous>, transform_indices = @transform_4, window_bounds = array<i64: 56, 128>}, {transform_indices = @transform_5, window_bounds = array<i64: 8, 128>}]} {
    %c0 = arith.constant 0 : index
    %c0_0 = arith.constant 0 : index
    %0 = vector.load %arg1[%c0, %c0_0] : memref<64x64xbf16, #tpu.memory_space<vmem>>, vector<64x64xbf16>
    %c0_1 = arith.constant 0 : index
    %c0_2 = arith.constant 0 : index
    %1 = vector.load %arg2[%c0_1, %c0_2] : memref<64x4xbf16, #tpu.memory_space<vmem>>, vector<64x4xbf16>
    %cst = arith.constant dense<0.000000e+00> : vector<64x4xf32>
    %2 = tpu.matmul %0, %1, %cst {dimension_numbers = #tpu.dot_dimension_numbers<[1], [0], [0], [1], [0, 0, 1, 1], [], []>} : vector<64x64xbf16>, vector<64x4xbf16>, vector<64x4xf32> -> vector<64x4xf32>
    %3 = arith.truncf %2 : vector<64x4xf32> to vector<64x4xbf16>
    %c0_3 = arith.constant 0 : index
    %c0_4 = arith.constant 0 : index
    %4 = vector.load %arg4[%c0_3, %c0_4] : memref<64x128xbf16, #tpu.memory_space<vmem>>, vector<4x32xbf16>
    %cst_5 = arith.constant dense<0.000000e+00> : vector<64x32xf32>
    %5 = tpu.matmul %3, %4, %cst_5 {dimension_numbers = #tpu.dot_dimension_numbers<[1], [0], [0], [1], [0, 0, 1, 1], [], []>} : vector<64x4xbf16>, vector<4x32xbf16>, vector<64x32xf32> -> vector<64x32xf32>
    %c0_6 = arith.constant 0 : index
    %c0_7 = arith.constant 0 : index
    %6 = vector.load %arg5[%c0_6, %c0_7] : memref<56x128xf32, #tpu.memory_space<vmem>>, vector<1x32xf32>
    %7 = vector.broadcast %6 : vector<1x32xf32> to vector<64x32xf32>
    %8 = arith.addf %5, %7 : vector<64x32xf32>
    %cst_8 = arith.constant 0.000000e+00 : f32
    %9 = vector.broadcast %cst_8 : f32 to vector<64x32xf32>
    %10 = arith.cmpf ogt, %8, %9 : vector<64x32xf32>
    %cst_9 = arith.constant 0.00999999977 : f32
    %11 = vector.broadcast %cst_9 : f32 to vector<64x32xf32>
    %12 = arith.mulf %11, %8 : vector<64x32xf32>
    %13 = arith.select %10, %8, %12 : vector<64x32xi1>, vector<64x32xf32>
    %14 = arith.truncf %13 : vector<64x32xf32> to vector<64x32xbf16>
    %c16 = arith.constant 16 : index
    %c0_10 = arith.constant 0 : index
    %15 = vector.load %arg4[%c16, %c0_10] : memref<64x128xbf16, #tpu.memory_space<vmem>>, vector<32x4xbf16>
    %cst_11 = arith.constant dense<0.000000e+00> : vector<64x4xf32>
    %16 = tpu.matmul %14, %15, %cst_11 {dimension_numbers = #tpu.dot_dimension_numbers<[1], [0], [0], [1], [0, 0, 1, 1], [], []>} : vector<64x32xbf16>, vector<32x4xbf16>, vector<64x4xf32> -> vector<64x4xf32>
    %17 = arith.truncf %16 : vector<64x4xf32> to vector<64x4xbf16>
    %cst_12 = arith.constant dense<0.000000e+00> : vector<64x4xf32>
    %18 = tpu.matmul %0, %17, %cst_12 {dimension_numbers = #tpu.dot_dimension_numbers<[1], [0], [0], [1], [0, 0, 1, 1], [], []>} : vector<64x64xbf16>, vector<64x4xbf16>, vector<64x4xf32> -> vector<64x4xf32>
    %c8 = arith.constant 8 : index
    %c0_13 = arith.constant 0 : index
    %19 = vector.load %arg5[%c8, %c0_13] : memref<56x128xf32, #tpu.memory_space<vmem>>, vector<1x4xf32>
    %20 = vector.broadcast %19 : vector<1x4xf32> to vector<64x4xf32>
    %21 = arith.addf %18, %20 : vector<64x4xf32>
    %cst_14 = arith.constant 0.000000e+00 : f32
    %22 = vector.broadcast %cst_14 : f32 to vector<64x4xf32>
    %23 = arith.cmpf ogt, %21, %22 : vector<64x4xf32>
    %cst_15 = arith.constant 0.00999999977 : f32
    %24 = vector.broadcast %cst_15 : f32 to vector<64x4xf32>
    %25 = arith.mulf %24, %21 : vector<64x4xf32>
    %26 = arith.select %23, %21, %25 : vector<64x4xi1>, vector<64x4xf32>
    %27 = arith.truncf %26 : vector<64x4xf32> to vector<64x4xbf16>
    %c48 = arith.constant 48 : index
    %c0_16 = arith.constant 0 : index
    %28 = vector.load %arg4[%c48, %c0_16] : memref<64x128xbf16, #tpu.memory_space<vmem>>, vector<4x2xbf16>
    %cst_17 = arith.constant dense<0.000000e+00> : vector<64x2xf32>
    %29 = tpu.matmul %27, %28, %cst_17 {dimension_numbers = #tpu.dot_dimension_numbers<[1], [0], [0], [1], [0, 0, 1, 1], [], []>} : vector<64x4xbf16>, vector<4x2xbf16>, vector<64x2xf32> -> vector<64x2xf32>
    %30 = arith.truncf %29 : vector<64x2xf32> to vector<64x2xbf16>
    %cst_18 = arith.constant dense<0.000000e+00> : vector<64x2xf32>
    %31 = tpu.matmul %0, %30, %cst_18 {dimension_numbers = #tpu.dot_dimension_numbers<[1], [0], [0], [1], [0, 0, 1, 1], [], []>} : vector<64x64xbf16>, vector<64x2xbf16>, vector<64x2xf32> -> vector<64x2xf32>
    %c16_19 = arith.constant 16 : index
    %c0_20 = arith.constant 0 : index
    %32 = vector.load %arg5[%c16_19, %c0_20] : memref<56x128xf32, #tpu.memory_space<vmem>>, vector<1x2xf32>
    %33 = vector.broadcast %32 : vector<1x2xf32> to vector<64x2xf32>
    %34 = arith.addf %31, %33 : vector<64x2xf32>
    %cst_21 = arith.constant 0.000000e+00 : f32
    %35 = vector.broadcast %cst_21 : f32 to vector<64x2xf32>
    %36 = arith.cmpf ogt, %34, %35 : vector<64x2xf32>
    %cst_22 = arith.constant 0.00999999977 : f32
    %37 = vector.broadcast %cst_22 : f32 to vector<64x2xf32>
    %38 = arith.mulf %37, %34 : vector<64x2xf32>
    %39 = arith.select %36, %34, %38 : vector<64x2xi1>, vector<64x2xf32>
    %c32 = arith.constant 32 : index
    %c0_23 = arith.constant 0 : index
    %40 = vector.load %arg5[%c32, %c0_23] : memref<56x128xf32, #tpu.memory_space<vmem>>, vector<1x2xf32>
    %41 = vector.extract_strided_slice %39 {offsets = [0, 0], sizes = [64, 1], strides = [1, 1]} : vector<64x2xf32> to vector<64x1xf32>
    %42 = vector.extract_strided_slice %40 {offsets = [0, 0], sizes = [1, 1], strides = [1, 1]} : vector<1x2xf32> to vector<1x1xf32>
    %43 = vector.broadcast %42 : vector<1x1xf32> to vector<64x1xf32>
    %44 = arith.mulf %41, %43 : vector<64x1xf32>
    %45 = vector.extract_strided_slice %39 {offsets = [0, 1], sizes = [64, 1], strides = [1, 1]} : vector<64x2xf32> to vector<64x1xf32>
    %46 = vector.extract_strided_slice %40 {offsets = [0, 1], sizes = [1, 1], strides = [1, 1]} : vector<1x2xf32> to vector<1x1xf32>
    %47 = vector.broadcast %46 : vector<1x1xf32> to vector<64x1xf32>
    %48 = arith.mulf %45, %47 : vector<64x1xf32>
    %49 = arith.addf %44, %48 : vector<64x1xf32>
    %50 = arith.truncf %49 : vector<64x1xf32> to vector<64x1xbf16>
    %cst_24 = arith.constant dense<0.000000e+00> : vector<64x1xf32>
    %51 = tpu.matmul %0, %50, %cst_24 {dimension_numbers = #tpu.dot_dimension_numbers<[1], [0], [0], [1], [0, 0, 1, 1], [], []>} : vector<64x64xbf16>, vector<64x1xbf16>, vector<64x1xf32> -> vector<64x1xf32>
    %c24 = arith.constant 24 : index
    %c0_25 = arith.constant 0 : index
    %52 = vector.load %arg5[%c24, %c0_25] : memref<56x128xf32, #tpu.memory_space<vmem>>, vector<1x1xf32>
    %53 = vector.broadcast %52 : vector<1x1xf32> to vector<64x1xf32>
    %54 = arith.addf %51, %53 : vector<64x1xf32>
    %cst_26 = arith.constant 0.000000e+00 : f32
    %55 = vector.broadcast %cst_26 : f32 to vector<64x1xf32>
    %56 = arith.cmpf ogt, %54, %55 : vector<64x1xf32>
    %cst_27 = arith.constant 0.00999999977 : f32
    %57 = vector.broadcast %cst_27 : f32 to vector<64x1xf32>
    %58 = arith.mulf %57, %54 : vector<64x1xf32>
    %59 = arith.select %56, %54, %58 : vector<64x1xi1>, vector<64x1xf32>
    %c0_28 = arith.constant 0 : index
    %c0_29 = arith.constant 0 : index
    %60 = vector.load %arg3[%c0_28, %c0_29] : memref<8x64xbf16, #tpu.memory_space<vmem>>, vector<8x64xbf16>
    %61 = arith.truncf %59 : vector<64x1xf32> to vector<64x1xbf16>
    %cst_30 = arith.constant dense<0.000000e+00> : vector<8x1xf32>
    %62 = tpu.matmul %60, %61, %cst_30 {dimension_numbers = #tpu.dot_dimension_numbers<[1], [0], [0], [1], [0, 0, 1, 1], [], []>} : vector<8x64xbf16>, vector<64x1xbf16>, vector<8x1xf32> -> vector<8x1xf32>
    %c40 = arith.constant 40 : index
    %c0_31 = arith.constant 0 : index
    %63 = vector.load %arg5[%c40, %c0_31] : memref<56x128xf32, #tpu.memory_space<vmem>>, vector<1x128xf32>
    %64 = vector.broadcast %62 : vector<8x1xf32> to vector<8x128xf32>
    %65 = vector.broadcast %63 : vector<1x128xf32> to vector<8x128xf32>
    %66 = arith.mulf %64, %65 : vector<8x128xf32>
    %c48_32 = arith.constant 48 : index
    %c0_33 = arith.constant 0 : index
    %67 = vector.load %arg5[%c48_32, %c0_33] : memref<56x128xf32, #tpu.memory_space<vmem>>, vector<1x128xf32>
    %68 = vector.broadcast %67 : vector<1x128xf32> to vector<8x128xf32>
    %69 = arith.addf %66, %68 : vector<8x128xf32>
    %70 = math.absf %69 : vector<8x128xf32>
    %cst_34 = arith.constant 0.000000e+00 : f32
    %71 = vector.broadcast %cst_34 : f32 to vector<8x128xf32>
    %72 = arith.subf %71, %70 : vector<8x128xf32>
    %73 = math.exp %72 : vector<8x128xf32>
    %cst_35 = arith.constant 1.000000e+00 : f32
    %74 = vector.broadcast %cst_35 : f32 to vector<8x128xf32>
    %75 = arith.addf %74, %73 : vector<8x128xf32>
    %76 = tpu.reciprocal %75 {approx = true} : vector<8x128xf32> -> vector<8x128xf32>
    %cst_36 = arith.constant 0.000000e+00 : f32
    %77 = vector.broadcast %cst_36 : f32 to vector<8x128xf32>
    %78 = arith.cmpf oge, %69, %77 : vector<8x128xf32>
    %79 = arith.mulf %73, %76 : vector<8x128xf32>
    %80 = arith.select %78, %76, %79 : vector<8x128xi1>, vector<8x128xf32>
    %cst_37 = arith.constant 1.000000e+00 : f32
    %81 = vector.broadcast %cst_37 : f32 to vector<8x128xf32>
    %82 = arith.minimumf %80, %81 : vector<8x128xf32>
    %c0_38 = arith.constant 0 : index
    %c0_39 = arith.constant 0 : index
    %83 = vector.load %arg6[%c0_38, %c0_39] : memref<8x128xf32, #tpu.memory_space<vmem>>, vector<8x128xf32>
    tpu.vector_store %arg6[%c0_38, %c0_39], %82 {strides = array<i32>} : memref<8x128xf32, #tpu.memory_space<vmem>>, vector<8x128xf32>,
    return
  }
  func.func @transform_0(%arg0: i32) -> (i32, i32) {
    %c0_i32 = arith.constant 0 : i32
    %c0_i32_0 = arith.constant 0 : i32
    %c0_i32_1 = arith.constant 0 : i32
    return %c0_i32, %c0_i32_0 : i32, i32
  }
  func.func @transform_1(%arg0: i32) -> (i32, i32) {
    %c0_i32 = arith.constant 0 : i32
    %c0_i32_0 = arith.constant 0 : i32
    return %arg0, %c0_i32 : i32, i32
  }
  func.func @transform_2(%arg0: i32) -> (i32, i32) {
    %c0_i32 = arith.constant 0 : i32
    %c0_i32_0 = arith.constant 0 : i32
    %c0_i32_1 = arith.constant 0 : i32
    return %c0_i32, %c0_i32_0 : i32, i32
  }
  func.func @transform_3(%arg0: i32) -> (i32, i32) {
    %c0_i32 = arith.constant 0 : i32
    %c0_i32_0 = arith.constant 0 : i32
    %c0_i32_1 = arith.constant 0 : i32
    return %c0_i32, %c0_i32_0 : i32, i32
  }
  func.func @transform_4(%arg0: i32) -> (i32, i32) {
    %c0_i32 = arith.constant 0 : i32
    %c0_i32_0 = arith.constant 0 : i32
    %c0_i32_1 = arith.constant 0 : i32
    return %c0_i32, %c0_i32_0 : i32, i32
  }
  func.func @transform_5(%arg0: i32) -> (i32, i32) {
    %c0_i32 = arith.constant 0 : i32
    %c0_i32_0 = arith.constant 0 : i32
    return %arg0, %c0_i32 : i32, i32
  }
}

</mosaic_0001>

<llo_original>
// kernel: gcn_classifier_forward.1
$region0: #{gcn_classifier_forward.1}
  #allocation0 [shape = 'u32[]', space=smem, size = 0x4, offset = 0x4, fixed_abs, tag = 'smem constant byte address 0x4 - core index']
  #allocation1 [shape = 'u32[144,128]{1,0:T(1,128)}', space=vmem, size = 0x12000, scoped, tag = 'internal scratch']
  %s0 = inlined_call_operand.vmem [shape: bf16[64,64], index: 0, kind: input, shape index: {}]
  %s1 = inlined_call_operand.vmem [shape: bf16[128,4], index: 1, kind: input, shape index: {}]
  %s2 = inlined_call_operand.vmem [shape: bf16[8,64], index: 2, kind: input, shape index: {}]
  %s3 = inlined_call_operand.vmem [shape: bf16[64,128], index: 3, kind: input, shape index: {}]
  %s4 = inlined_call_operand.vmem [shape: f32[56,128], index: 4, kind: input, shape index: {}]
  %s5 = inlined_call_operand.vmem [shape: f32[16,128], index: 5, kind: output, shape index: {}]
  %s6 = sld [smem:[#allocation0]]
  $region53: #{gcn_classifier_forward.1} parent=0
    _
  %s8 = ssub.s32 1, %s6
  %s9 = scalar_select 0, %s8, %s6
  loop: start=0, step=1, limit=4
  $region2: #{gcn_classifier_forward.1} parent=0 // loop_pre_header
    _
  $region3: #{gcn_classifier_forward.1} parent=0 // loop_header
    %s11 = sphi 0, %s15
    %p12 = scmp.ge.s32.totalorder %s11, 4
    %s19 = sphi 0, %s19
    %s21 = sphi 0, %s19
    %s22 = sphi 0, %s21
    %s36 = sphi 0, %s22
    %s42 = sphi 0, %s44
    %s45 = sphi 0, %s42
    %s46 = sphi 0, %s45
    %s62 = sphi 0, %s46
    %s66 = sphi 0, %s66
    %s68 = sphi 0, %s66
    %s69 = sphi 0, %s68
    %s83 = sphi 0, %s69
    %s87 = sphi 0, %s87
    %s89 = sphi 0, %s87
    %s90 = sphi 0, %s89
    %s104 = sphi 0, %s90
    %s108 = sphi 0, %s108
    %s110 = sphi 0, %s108
    %s111 = sphi 0, %s110
    %s125 = sphi 0, %s111
    %s131 = sphi 0, %s133
    %s134 = sphi 0, %s131
    %s135 = sphi 0, %s134
    %s151 = sphi 0, %s135
  $region4: #{gcn_classifier_forward.1} parent=0 // loop_header_branch
    %14 = sbr.rel (%p12) target = $region8
  $region5: #{gcn_classifier_forward.1} parent=0 // loop_body
    %s16 = ssub.s32 %s11, 1
    %s17 = ssub.s32 %s11, 2
    %s18 = sadd.s32 %s11, 1
    %s20 = sadd.s32 %s19, 1
    %p23 = scmp.eq.s32.totalorder %s11, 1
    %p24 = scmp.ne.s32.totalorder %s19, %s21
    %p25 = scmp.eq.s32.totalorder %s11, 0
    %p26 = por %p24, %p25
    %p27 = scmp.ne.s32.totalorder %s19, %s21
    %p28 = scmp.eq.s32.totalorder %s16, 1
    %p29 = por %p27, %p28
    %p30 = scmp.ne.s32.totalorder %s21, %s22
    %p31 = scmp.eq.s32.totalorder %s16, 0
    %p32 = por %p30, %p31
    %p33 = scmp.ne.s32.totalorder %s21, %s22
    %p34 = scmp.eq.s32.totalorder %s17, 1
    %p35 = por %p33, %p34
    %p37 = scmp.ne.s32.totalorder %s22, %s36
    %p38 = scmp.eq.s32.totalorder %s17, 0
    %p39 = por %p37, %p38
    %s40 = ssub.s32 %s11, %s18
    %p41 = scmp.eq.s32.totalorder %s40, 0
    %s43 = sadd.s32 %s42, 1
    %s44 = scalar_select %p41, %s42, %s43
    %p47 = pneg %p41
    %p48 = scmp.eq.s32.totalorder %s11, 1
    %p49 = por %p47, %p48
    %p50 = scmp.ne.s32.totalorder %s42, %s45
    %p51 = scmp.eq.s32.totalorder %s11, 0
    %p52 = por %p50, %p51
    %p53 = scmp.ne.s32.totalorder %s42, %s45
    %p54 = scmp.eq.s32.totalorder %s16, 1
    %p55 = por %p53, %p54
    %p56 = scmp.ne.s32.totalorder %s45, %s46
    %p57 = scmp.eq.s32.totalorder %s16, 0
    %p58 = por %p56, %p57
    %p59 = scmp.ne.s32.totalorder %s45, %s46
    %p60 = scmp.eq.s32.totalorder %s17, 1
    %p61 = por %p59, %p60
    %p63 = scmp.ne.s32.totalorder %s46, %s62
    %p64 = scmp.eq.s32.totalorder %s17, 0
    %p65 = por %p63, %p64
    %s67 = sadd.s32 %s66, 1
    %p70 = scmp.eq.s32.totalorder %s11, 1
    %p71 = scmp.ne.s32.totalorder %s66, %s68
    %p72 = scmp.eq.s32.totalorder %s11, 0
    %p73 = por %p71, %p72
    %p74 = scmp.ne.s32.totalorder %s66, %s68
    %p75 = scmp.eq.s32.totalorder %s16, 1
    %p76 = por %p74, %p75
    %p77 = scmp.ne.s32.totalorder %s68, %s69
    %p78 = scmp.eq.s32.totalorder %s16, 0
    %p79 = por %p77, %p78
    %p80 = scmp.ne.s32.totalorder %s68, %s69
    %p81 = scmp.eq.s32.totalorder %s17, 1
    %p82 = por %p80, %p81
    %p84 = scmp.ne.s32.totalorder %s69, %s83
    %p85 = scmp.eq.s32.totalorder %s17, 0
    %p86 = por %p84, %p85
    %s88 = sadd.s32 %s87, 1
    %p91 = scmp.eq.s32.totalorder %s11, 1
    %p92 = scmp.ne.s32.totalorder %s87, %s89
    %p93 = scmp.eq.s32.totalorder %s11, 0
    %p94 = por %p92, %p93
    %p95 = scmp.ne.s32.totalorder %s87, %s89
    %p96 = scmp.eq.s32.totalorder %s16, 1
    %p97 = por %p95, %p96
    %p98 = scmp.ne.s32.totalorder %s89, %s90
    %p99 = scmp.eq.s32.totalorder %s16, 0
    %p100 = por %p98, %p99
    %p101 = scmp.ne.s32.totalorder %s89, %s90
    %p102 = scmp.eq.s32.totalorder %s17, 1
    %p103 = por %p101, %p102
    %p105 = scmp.ne.s32.totalorder %s90, %s104
    %p106 = scmp.eq.s32.totalorder %s17, 0
    %p107 = por %p105, %p106
    %s109 = sadd.s32 %s108, 1
    %p112 = scmp.eq.s32.totalorder %s11, 1
    %p113 = scmp.ne.s32.totalorder %s108, %s110
    %p114 = scmp.eq.s32.totalorder %s11, 0
    %p115 = por %p113, %p114
    %p116 = scmp.ne.s32.totalorder %s108, %s110
    %p117 = scmp.eq.s32.totalorder %s16, 1
    %p118 = por %p116, %p117
    %p119 = scmp.ne.s32.totalorder %s110, %s111
    %p120 = scmp.eq.s32.totalorder %s16, 0
    %p121 = por %p119, %p120
    %p122 = scmp.ne.s32.totalorder %s110, %s111
    %p123 = scmp.eq.s32.totalorder %s17, 1
    %p124 = por %p122, %p123
    %p126 = scmp.ne.s32.totalorder %s111, %s125
    %p127 = scmp.eq.s32.totalorder %s17, 0
    %p128 = por %p126, %p127
    %s129 = ssub.s32 %s11, %s18
    %p130 = scmp.eq.s32.totalorder %s129, 0
    %s132 = sadd.s32 %s131, 1
    %s133 = scalar_select %p130, %s131, %s132
    %p136 = pneg %p130
    %p137 = scmp.eq.s32.totalorder %s11, 1
    %p138 = por %p136, %p137
    %p139 = scmp.ne.s32.totalorder %s131, %s134
    %p140 = scmp.eq.s32.totalorder %s11, 0
    %p141 = por %p139, %p140
    %p142 = scmp.ne.s32.totalorder %s131, %s134
    %p143 = scmp.eq.s32.totalorder %s16, 1
    %p144 = por %p142, %p143
    %p145 = scmp.ne.s32.totalorder %s134, %s135
    %p146 = scmp.eq.s32.totalorder %s16, 0
    %p147 = por %p145, %p146
    %p148 = scmp.ne.s32.totalorder %s134, %s135
    %p149 = scmp.eq.s32.totalorder %s17, 1
    %p150 = por %p148, %p149
    %p152 = scmp.ne.s32.totalorder %s135, %s151
    %p153 = scmp.eq.s32.totalorder %s17, 0
    %p154 = por %p152, %p153
    %p155 = scmp.le.s32.totalorder 1, %s11
    %p156 = scmp.lt.s32.totalorder %s11, 3
    %p157 = pnand %p155, %p156
    %p158 = pneg %p157
    // Predicated region
    $region9: #{gcn_classifier_forward.1} parent=5 // pred_check
      _
    $region10: #{gcn_classifier_forward.1} parent=5 // pred_check_branch
      %160 = sbr.rel (%p157) target = $region12
    $region11: #{gcn_classifier_forward.1} parent=5 // pred_region
      %s161 = ssub.s32 %s11, 1
      // Predicated region
      $region13: #{gcn_classifier_forward.1} parent=11 // pred_check
        %p162 = pneg %p32
      $region14: #{gcn_classifier_forward.1} parent=11 // pred_check_branch
        %164 = sbr.rel (%p162) target = $region16
      $region15: #{gcn_classifier_forward.1} parent=11 // pred_region
        _
      $region16: #{gcn_classifier_forward.1} parent=11 // pred_fallthru
        _
      // Predicated region
      $region17: #{gcn_classifier_forward.1} parent=11 // pred_check
        %p165 = pneg %p79
      $region18: #{gcn_classifier_forward.1} parent=11 // pred_check_branch
        %167 = sbr.rel (%p165) target = $region20
      $region19: #{gcn_classifier_forward.1} parent=11 // pred_region
        _
      $region20: #{gcn_classifier_forward.1} parent=11 // pred_fallthru
        _
      // Predicated region
      $region21: #{gcn_classifier_forward.1} parent=11 // pred_check
        %p168 = pneg %p100
      $region22: #{gcn_classifier_forward.1} parent=11 // pred_check_branch
        %170 = sbr.rel (%p168) target = $region24
      $region23: #{gcn_classifier_forward.1} parent=11 // pred_region
        _
      $region24: #{gcn_classifier_forward.1} parent=11 // pred_fallthru
        _
      // Predicated region
      $region25: #{gcn_classifier_forward.1} parent=11 // pred_check
        %p171 = pneg %p121
      $region26: #{gcn_classifier_forward.1} parent=11 // pred_check_branch
        %173 = sbr.rel (%p171) target = $region28
      $region27: #{gcn_classifier_forward.1} parent=11 // pred_region
        _
      $region28: #{gcn_classifier_forward.1} parent=11 // pred_fallthru
        _
    $region12: #{gcn_classifier_forward.1} parent=5 // pred_fallthru
      _
    %p174 = scmp.lt.s32.totalorder %s11, 2
    // Predicated region
    $region29: #{gcn_classifier_forward.1} parent=5 // pred_check
      %p175 = pneg %p174
    $region30: #{gcn_classifier_forward.1} parent=5 // pred_check_branch
      %177 = sbr.rel (%p175) target = $region32
    $region31: #{gcn_classifier_forward.1} parent=5 // pred_region
      // Predicated region
      $region33: #{gcn_classifier_forward.1} parent=31 // pred_check
        %p178 = pneg %p52
      $region34: #{gcn_classifier_forward.1} parent=31 // pred_check_branch
        %180 = sbr.rel (%p178) target = $region36
      $region35: #{gcn_classifier_forward.1} parent=31 // pred_region
        %s181 = smul.u32 8, %s11
        %p182 = scmp.lt.s32.totalorder %s181, 15
        %s183 = scalar_select %p182, %s181, 15
        %s184 = smul.addr %s183, 4
        %s185 = scalar_lea.vmem %s1, %s184
        %s186 = smul.u32 8, %s11
      $region36: #{gcn_classifier_forward.1} parent=31 // pred_fallthru
        _
    $region32: #{gcn_classifier_forward.1} parent=5 // pred_fallthru
      _
    %p187 = scmp.le.s32.totalorder 1, %s11
    %p188 = scmp.lt.s32.totalorder %s11, 3
    %p189 = pnand %p187, %p188
    %p190 = pneg %p189
    // Predicated region
    $region37: #{gcn_classifier_forward.1} parent=5 // pred_check
      _
    $region38: #{gcn_classifier_forward.1} parent=5 // pred_check_branch
      %192 = sbr.rel (%p189) target = $region40
    $region39: #{gcn_classifier_forward.1} parent=5 // pred_region
      %s193 = ssub.s32 %s11, 1
      %p194 = pneg %p32
      %p195 = pneg %p29
      %s196 = smul.u32 8, %s16
      %p197 = scmp.lt.s32.totalorder %s196, 15
      %s198 = scalar_select %p197, %s196, 15
      %s199 = smul.addr %s198, 4
      %s200 = scalar_lea.vmem %s1, %s199
      %p201 = pneg %p58
      %p202 = pneg %p55
      %p203 = pneg %p79
      %p204 = pneg %p76
      %p205 = pneg %p100
      %p206 = pneg %p97
      %p207 = pneg %p121
      %p208 = pneg %p118
      %p209 = pneg %p147
      %p210 = pneg %p144
      %p211 = scmp.lt.s32.totalorder %s16, 1
      %s212 = scalar_select %p211, %s16, 1
      %s213 = smul.addr %s212, 8
      %s214 = scalar_lea.vmem %s5, %s213
      %s215 = smul.u32 8, %s16
      %p216 = scmp.lt.s32.totalorder %s215, 15
      %s217 = scalar_select %p216, %s215, 15
      %s218 = smul.addr %s217, 4
      %s219 = scalar_lea.vmem %s1, %s218
      %s220 = smul.u32 8, %s16
      %p221 = scmp.lt.s32.totalorder %s16, 1
      %s222 = scalar_select %p221, %s16, 1
      %s223 = smul.addr %s222, 8
      %s224 = scalar_lea.vmem %s5, %s223
      %v226 = vld [vmem:[%s0] sm:$0xf]
      %v227 = vld [vmem:[%s0 + $0x4] sm:$0xf]
      %v228 = vld [vmem:[%s0 + $0x8] sm:$0xf]
      %v229 = vld [vmem:[%s0 + $0xc] sm:$0xf]
      %v230 = vld [vmem:[%s0 + $0x10] sm:$0xf]
      %v231 = vld [vmem:[%s0 + $0x14] sm:$0xf]
      %v232 = vld [vmem:[%s0 + $0x18] sm:$0xf]
      %v233 = vld [vmem:[%s0 + $0x1c] sm:$0xf]
      %v234 = vld [vmem:[%s219] sm:$0xf]
      %v235 = vld [vmem:[%s219 + $0x4] sm:$0xf]
      %v236 = vld [vmem:[%s219 + $0x8] sm:$0xf]
      %v237 = vld [vmem:[%s219 + $0xc] sm:$0xf]
      %v238 = vld [vmem:[%s219 + $0x10] sm:$0xf]
      %v239 = vld [vmem:[%s219 + $0x14] sm:$0xf]
      %v240 = vld [vmem:[%s219 + $0x18] sm:$0xf]
      %v241 = vld [vmem:[%s219 + $0x1c] sm:$0xf]
      %v250 = vunpack.c.l.b16 %v226
      %v251 = vunpack.c.l.b16 %v227
      %v252 = vunpack.c.l.b16 %v228
      %v253 = vunpack.c.l.b16 %v229
      %v254 = vunpack.c.l.b16 %v230
      %v255 = vunpack.c.l.b16 %v231
      %v256 = vunpack.c.l.b16 %v232
      %v257 = vunpack.c.l.b16 %v233
      %v258 = vpack.c.b16 %v251, %v250
      %v259 = vpack.c.b16 %v253, %v252
      %v260 = vpack.c.b16 %v255, %v254
      %v261 = vpack.c.b16 %v257, %v256
      %v270 = vunpack.c.l.b16 %v234
      %v271 = vunpack.c.l.b16 %v235
      %v272 = vunpack.c.l.b16 %v236
      %v273 = vunpack.c.l.b16 %v237
      %v274 = vunpack.c.l.b16 %v238
      %v275 = vunpack.c.l.b16 %v239
      %v276 = vunpack.c.l.b16 %v240
      %v277 = vunpack.c.l.b16 %v241
      %v278 = vpack.c.b16 %v271, %v270
      %v279 = vpack.c.b16 %v273, %v272
      %v280 = vpack.c.b16 %v275, %v274
      %v281 = vpack.c.b16 %v277, %v276
      %vm286 = vcmask 523264
      %v288 = vsel %vm286, %v258, 0
      %v291 = vsel %vm286, %v259, 0
      %v294 = vsel %vm286, %v260, 0
      %v297 = vsel %vm286, %v261, 0
      %299 = vmatprep.subr.bf16.mxu0 0
      %300 = vmatpush1.bf16.msra.mxu0 %v278
      %301 = vmatprep.subr.bf16.mxu0 0
      %302 = vmatpush1.bf16.msra.mxu0 %v279
      %303 = vmatprep.subr.bf16.mxu0 0
      %304 = vmatpush1.bf16.msra.mxu0 %v280
      %305 = vmatprep.subr.bf16.mxu0 0
      %306 = vmatpush1.bf16.msra.mxu0 %v281
      %307 = vmatprep.subr.bf16.mxu0 0
      %308 = vmatpush1.bf16.msra.mxu0 0
      %309 = vmatprep.subr.bf16.mxu0 0
      %310 = vmatpush1.bf16.msra.mxu0 0
      %311 = vmatprep.subr.bf16.mxu0 0
      %312 = vmatpush1.bf16.msra.mxu0 0
      %313 = vmatprep.subr.bf16.mxu0 0
      %314 = vmatpush1.bf16.msra.mxu0 0
      %315 = vmatprep.subr.bf16.mxu0 0
      %316 = vmatpush1.bf16.msra.mxu0 0
      %317 = vmatprep.subr.bf16.mxu0 0
      %318 = vmatpush1.bf16.msra.mxu0 0
      %319 = vmatprep.subr.bf16.mxu0 0
      %320 = vmatpush1.bf16.msra.mxu0 0
      %321 = vmatprep.subr.bf16.mxu0 0
      %322 = vmatpush1.bf16.msra.mxu0 0
      %323 = vmatprep.subr.bf16.mxu0 0
      %324 = vmatpush1.bf16.msra.mxu0 0
      %325 = vmatprep.subr.bf16.mxu0 0
      %326 = vmatpush1.bf16.msra.mxu0 0
      %327 = vmatprep.subr.bf16.mxu0 0
      %328 = vmatpush1.bf16.msra.mxu0 0
      %329 = vmatprep.subr.bf16.mxu0 0
      %330 = vmatpush1.bf16.msra.mxu0 0
      %331 = vmatprep.mubr.bf16.mxu0 0
      %332 = vmatmul.mubr.bf16.gmra.mrb[0].mxu0 %v288
      %v333 = vpop.f32.mrb[0].mxu0
      %v334 = vadd.f32 0.0, %v333
      %v335 = vpop.f32.mrb[0].mxu0
      %v336 = vpop.f32.mrb[0].mxu0
      %v337 = vadd.f32 0.0, %v336
      %v338 = vpop.f32.mrb[0].mxu0
      %339 = vmatprep.mubr.bf16.mxu0 0
      %340 = vmatmul.mubr.bf16.gmra.mrb[0].mxu0 %v291
      %v341 = vpop.f32.mrb[0].mxu0
      %v342 = vadd.f32 0.0, %v341
      %v343 = vpop.f32.mrb[0].mxu0
      %v344 = vpop.f32.mrb[0].mxu0
      %v345 = vadd.f32 0.0, %v344
      %v346 = vpop.f32.mrb[0].mxu0
      %347 = vmatprep.mubr.bf16.mxu0 0
      %348 = vmatmul.mubr.bf16.gmra.mrb[0].mxu0 %v294
      %v349 = vpop.f32.mrb[0].mxu0
      %v350 = vadd.f32 0.0, %v349
      %v351 = vpop.f32.mrb[0].mxu0
      %v352 = vpop.f32.mrb[0].mxu0
      %v353 = vadd.f32 0.0, %v352
      %v354 = vpop.f32.mrb[0].mxu0
      %355 = vmatprep.mubr.bf16.mxu0 0
      %356 = vmatmul.mubr.bf16.gmra.mrb[0].mxu0 %v297
      %v357 = vpop.f32.mrb[0].mxu0
      %v358 = vadd.f32 0.0, %v357
      %v359 = vpop.f32.mrb[0].mxu0
      %v360 = vpop.f32.mrb[0].mxu0
      %v361 = vadd.f32 0.0, %v360
      %v362 = vpop.f32.mrb[0].mxu0
      %363 = vdwg.mxu0
      %v364 = vpack.c.bf16 %v337, %v334
      %v365 = vpack.c.bf16 %v345, %v342
      %v366 = vpack.c.bf16 %v353, %v350
      %v367 = vpack.c.bf16 %v361, %v358
      %v368 = vld [vmem:[%s3] sm:$0x3]
      %v369 = vld [vmem:[%s4] sm:$0x1]
      %v370 = vlaneseq
      %v371 = vshrl.u32 %v370, 7
      %v372 = vsub.s32 0, %v371
      %v373 = vrot.slane %v369, %v372
      %vm374 = vcmask 31744
      %v376 = vsel %vm374, %v364, 0
      %v379 = vsel %vm374, %v365, 0
      %v382 = vsel %vm374, %v366, 0
      %v385 = vsel %vm374, %v367, 0
      %vm387 = vcmask 1041408
      %v389 = vsel %vm387, %v368, 0
      %391 = vmatprep.subr.bf16.mxu0 0
      %392 = vmatpush1.bf16.msra.mxu0 %v389
      %393 = vmatprep.subr.bf16.mxu0 0
      %394 = vmatpush1.bf16.msra.mxu0 0
      %395 = vmatprep.subr.bf16.mxu0 0
      %396 = vmatpush1.bf16.msra.mxu0 0
      %397 = vmatprep.subr.bf16.mxu0 0
      %398 = vmatpush1.bf16.msra.mxu0 0
      %399 = vmatprep.subr.bf16.mxu0 0
      %400 = vmatpush1.bf16.msra.mxu0 0
      %401 = vmatprep.subr.bf16.mxu0 0
      %402 = vmatpush1.bf16.msra.mxu0 0
      %403 = vmatprep.subr.bf16.mxu0 0
      %404 = vmatpush1.bf16.msra.mxu0 0
      %405 = vmatprep.subr.bf16.mxu0 0
      %406 = vmatpush1.bf16.msra.mxu0 0
      %407 = vmatprep.subr.bf16.mxu0 0
      %408 = vmatpush1.bf16.msra.mxu0 0
      %409 = vmatprep.subr.bf16.mxu0 0
      %410 = vmatpush1.bf16.msra.mxu0 0
      %411 = vmatprep.subr.bf16.mxu0 0
      %412 = vmatpush1.bf16.msra.mxu0 0
      %413 = vmatprep.subr.bf16.mxu0 0
      %414 = vmatpush1.bf16.msra.mxu0 0
      %415 = vmatprep.subr.bf16.mxu0 0
      %416 = vmatpush1.bf16.msra.mxu0 0
      %417 = vmatprep.subr.bf16.mxu0 0
      %418 = vmatpush1.bf16.msra.mxu0 0
      %419 = vmatprep.subr.bf16.mxu0 0
      %420 = vmatpush1.bf16.msra.mxu0 0
      %421 = vmatprep.subr.bf16.mxu0 0
      %422 = vmatpush1.bf16.msra.mxu0 0
      %423 = vmatprep.mubr.bf16.mxu0 0
      %424 = vmatmul.mubr.bf16.gmra.mrb[0].mxu0 %v376
      %v425 = vpop.f32.mrb[0].mxu0
      %v426 = vadd.f32 %v373, %v425
      %v427 = vpop.f32.mrb[0].mxu0
      %v428 = vpop.f32.mrb[0].mxu0
      %v429 = vadd.f32 %v373, %v428
      %v430 = vpop.f32.mrb[0].mxu0
      %431 = vmatprep.mubr.bf16.mxu0 0
      %432 = vmatmul.mubr.bf16.gmra.mrb[0].mxu0 %v379
      %v433 = vpop.f32.mrb[0].mxu0
      %v434 = vadd.f32 %v373, %v433
      %v435 = vpop.f32.mrb[0].mxu0
      %v436 = vpop.f32.mrb[0].mxu0
      %v437 = vadd.f32 %v373, %v436
      %v438 = vpop.f32.mrb[0].mxu0
      %439 = vmatprep.mubr.bf16.mxu0 0
      %440 = vmatmul.mubr.bf16.gmra.mrb[0].mxu0 %v382
      %v441 = vpop.f32.mrb[0].mxu0
      %v442 = vadd.f32 %v373, %v441
      %v443 = vpop.f32.mrb[0].mxu0
      %v444 = vpop.f32.mrb[0].mxu0
      %v445 = vadd.f32 %v373, %v444
      %v446 = vpop.f32.mrb[0].mxu0
      %447 = vmatprep.mubr.bf16.mxu0 0
      %448 = vmatmul.mubr.bf16.gmra.mrb[0].mxu0 %v385
      %v449 = vpop.f32.mrb[0].mxu0
      %v450 = vadd.f32 %v373, %v449
      %v451 = vpop.f32.mrb[0].mxu0
      %v452 = vpop.f32.mrb[0].mxu0
      %v453 = vadd.f32 %v373, %v452
      %v454 = vpop.f32.mrb[0].mxu0
      %455 = vdwg.mxu0
      %vm456 = vcmp.gt.f32.partialorder %v426, 0.0
      %vm457 = vcmp.gt.f32.partialorder %v429, 0.0
      %vm458 = vcmp.gt.f32.partialorder %v434, 0.0
      %vm459 = vcmp.gt.f32.partialorder %v437, 0.0
      %vm460 = vcmp.gt.f32.partialorder %v442, 0.0
      %vm461 = vcmp.gt.f32.partialorder %v445, 0.0
      %vm462 = vcmp.gt.f32.partialorder %v450, 0.0
      %vm463 = vcmp.gt.f32.partialorder %v453, 0.0
      %v464 = vmul.f32 %v426, 0.01
      %v465 = vmul.f32 %v429, 0.01
      %v466 = vmul.f32 %v434, 0.01
      %v467 = vmul.f32 %v437, 0.01
      %v468 = vmul.f32 %v442, 0.01
      %v469 = vmul.f32 %v445, 0.01
      %v470 = vmul.f32 %v450, 0.01
      %v471 = vmul.f32 %v453, 0.01
      %v472 = vsel %vm456, %v426, %v464
      %v473 = vsel %vm457, %v429, %v465
      %v474 = vsel %vm458, %v434, %v466
      %v475 = vsel %vm459, %v437, %v467
      %v476 = vsel %vm460, %v442, %v468
      %v477 = vsel %vm461, %v445, %v469
      %v478 = vsel %vm462, %v450, %v470
      %v479 = vsel %vm463, %v453, %v471
      %v480 = vpack.c.bf16 %v473, %v472
      %v481 = vpack.c.bf16 %v475, %v474
      %v482 = vpack.c.bf16 %v477, %v476
      %v483 = vpack.c.bf16 %v479, %v478
      %v484 = vld [vmem:[%s3 + $0x8] sm:$0xf]
      %v485 = vld [vmem:[%s3 + $0xc] sm:$0xf]
      %v486 = vld [vmem:[%s3 + $0x10] sm:$0xf]
      %v487 = vld [vmem:[%s3 + $0x14] sm:$0xf]
      %v492 = vunpack.c.l.b16 %v484
      %v493 = vunpack.c.l.b16 %v485
      %v494 = vunpack.c.l.b16 %v486
      %v495 = vunpack.c.l.b16 %v487
      %v496 = vpack.c.b16 %v493, %v492
      %v497 = vpack.c.b16 %v495, %v494
      %vm500 = vcmask 261120
      %v502 = vsel %vm500, %v480, 0
      %v505 = vsel %vm500, %v481, 0
      %v508 = vsel %vm500, %v482, 0
      %v511 = vsel %vm500, %v483, 0
      %513 = vmatprep.subr.bf16.mxu0 0
      %514 = vmatpush1.bf16.msra.mxu0 %v496
      %515 = vmatprep.subr.bf16.mxu0 0
      %516 = vmatpush1.bf16.msra.mxu0 %v497
      %517 = vmatprep.subr.bf16.mxu0 0
      %518 = vmatpush1.bf16.msra.mxu0 0
      %519 = vmatprep.subr.bf16.mxu0 0
      %520 = vmatpush1.bf16.msra.mxu0 0
      %521 = vmatprep.subr.bf16.mxu0 0
      %522 = vmatpush1.bf16.msra.mxu0 0
      %523 = vmatprep.subr.bf16.mxu0 0
      %524 = vmatpush1.bf16.msra.mxu0 0
      %525 = vmatprep.subr.bf16.mxu0 0
      %526 = vmatpush1.bf16.msra.mxu0 0
      %527 = vmatprep.subr.bf16.mxu0 0
      %528 = vmatpush1.bf16.msra.mxu0 0
      %529 = vmatprep.subr.bf16.mxu0 0
      %530 = vmatpush1.bf16.msra.mxu0 0
      %531 = vmatprep.subr.bf16.mxu0 0
      %532 = vmatpush1.bf16.msra.mxu0 0
      %533 = vmatprep.subr.bf16.mxu0 0
      %534 = vmatpush1.bf16.msra.mxu0 0
      %535 = vmatprep.subr.bf16.mxu0 0
      %536 = vmatpush1.bf16.msra.mxu0 0
      %537 = vmatprep.subr.bf16.mxu0 0
      %538 = vmatpush1.bf16.msra.mxu0 0
      %539 = vmatprep.subr.bf16.mxu0 0
      %540 = vmatpush1.bf16.msra.mxu0 0
      %541 = vmatprep.subr.bf16.mxu0 0
      %542 = vmatpush1.bf16.msra.mxu0 0
      %543 = vmatprep.subr.bf16.mxu0 0
      %544 = vmatpush1.bf16.msra.mxu0 0
      %545 = vmatprep.mubr.bf16.mxu0 0
      %546 = vmatmul.mubr.bf16.gmra.mrb[0].mxu0 %v502
      %v547 = vpop.f32.mrb[0].mxu0
      %v548 = vadd.f32 0.0, %v547
      %v549 = vpop.f32.mrb[0].mxu0
      %v550 = vpop.f32.mrb[0].mxu0
      %v551 = vadd.f32 0.0, %v550
      %v552 = vpop.f32.mrb[0].mxu0
      %553 = vmatprep.mubr.bf16.mxu0 0
      %554 = vmatmul.mubr.bf16.gmra.mrb[0].mxu0 %v505
      %v555 = vpop.f32.mrb[0].mxu0
      %v556 = vadd.f32 0.0, %v555
      %v557 = vpop.f32.mrb[0].mxu0
      %v558 = vpop.f32.mrb[0].mxu0
      %v559 = vadd.f32 0.0, %v558
      %v560 = vpop.f32.mrb[0].mxu0
      %561 = vmatprep.mubr.bf16.mxu0 0
      %562 = vmatmul.mubr.bf16.gmra.mrb[0].mxu0 %v508
      %v563 = vpop.f32.mrb[0].mxu0
      %v564 = vadd.f32 0.0, %v563
      %v565 = vpop.f32.mrb[0].mxu0
      %v566 = vpop.f32.mrb[0].mxu0
      %v567 = vadd.f32 0.0, %v566
      %v568 = vpop.f32.mrb[0].mxu0
      %569 = vmatprep.mubr.bf16.mxu0 0
      %570 = vmatmul.mubr.bf16.gmra.mrb[0].mxu0 %v511
      %v571 = vpop.f32.mrb[0].mxu0
      %v572 = vadd.f32 0.0, %v571
      %v573 = vpop.f32.mrb[0].mxu0
      %v574 = vpop.f32.mrb[0].mxu0
      %v575 = vadd.f32 0.0, %v574
      %v576 = vpop.f32.mrb[0].mxu0
      %577 = vdwg.mxu0
      %v578 = vpack.c.bf16 %v551, %v548
      %v579 = vpack.c.bf16 %v559, %v556
      %v580 = vpack.c.bf16 %v567, %v564
      %v581 = vpack.c.bf16 %v575, %v572
      %v582 = vld [vmem:[%s4 + $0x8] sm:$0x1]
      %v583 = vlaneseq
      %v584 = vshrl.u32 %v583, 7
      %v585 = vsub.s32 0, %v584
      %v586 = vrot.slane %v582, %v585
      %587 = vmatprep.subr.bf16.mxu0 0
      %588 = vmatpush1.bf16.msra.mxu0 %v578
      %589 = vmatprep.subr.bf16.mxu0 0
      %590 = vmatpush1.bf16.msra.mxu0 %v579
      %591 = vmatprep.subr.bf16.mxu0 0
      %592 = vmatpush1.bf16.msra.mxu0 %v580
      %593 = vmatprep.subr.bf16.mxu0 0
      %594 = vmatpush1.bf16.msra.mxu0 %v581
      %595 = vmatprep.subr.bf16.mxu0 0
      %596 = vmatpush1.bf16.msra.mxu0 0
      %597 = vmatprep.subr.bf16.mxu0 0
      %598 = vmatpush1.bf16.msra.mxu0 0
      %599 = vmatprep.subr.bf16.mxu0 0
      %600 = vmatpush1.bf16.msra.mxu0 0
      %601 = vmatprep.subr.bf16.mxu0 0
      %602 = vmatpush1.bf16.msra.mxu0 0
      %603 = vmatprep.subr.bf16.mxu0 0
      %604 = vmatpush1.bf16.msra.mxu0 0
      %605 = vmatprep.subr.bf16.mxu0 0
      %606 = vmatpush1.bf16.msra.mxu0 0
      %607 = vmatprep.subr.bf16.mxu0 0
      %608 = vmatpush1.bf16.msra.mxu0 0
      %609 = vmatprep.subr.bf16.mxu0 0
      %610 = vmatpush1.bf16.msra.mxu0 0
      %611 = vmatprep.subr.bf16.mxu0 0
      %612 = vmatpush1.bf16.msra.mxu0 0
      %613 = vmatprep.subr.bf16.mxu0 0
      %614 = vmatpush1.bf16.msra.mxu0 0
      %615 = vmatprep.subr.bf16.mxu0 0
      %616 = vmatpush1.bf16.msra.mxu0 0
      %617 = vmatprep.subr.bf16.mxu0 0
      %618 = vmatpush1.bf16.msra.mxu0 0
      %619 = vmatprep.mubr.bf16.mxu0 0
      %620 = vmatmul.mubr.bf16.gmra.mrb[0].mxu0 %v288
      %v621 = vpop.f32.mrb[0].mxu0
      %v622 = vadd.f32 %v586, %v621
      %v623 = vpop.f32.mrb[0].mxu0
      %v624 = vpop.f32.mrb[0].mxu0
      %v625 = vadd.f32 %v586, %v624
      %v626 = vpop.f32.mrb[0].mxu0
      %627 = vmatprep.mubr.bf16.mxu0 0
      %628 = vmatmul.mubr.bf16.gmra.mrb[0].mxu0 %v291
      %v629 = vpop.f32.mrb[0].mxu0
      %v630 = vadd.f32 %v586, %v629
      %v631 = vpop.f32.mrb[0].mxu0
      %v632 = vpop.f32.mrb[0].mxu0
      %v633 = vadd.f32 %v586, %v632
      %v634 = vpop.f32.mrb[0].mxu0
      %635 = vmatprep.mubr.bf16.mxu0 0
      %636 = vmatmul.mubr.bf16.gmra.mrb[0].mxu0 %v294
      %v637 = vpop.f32.mrb[0].mxu0
      %v638 = vadd.f32 %v586, %v637
      %v639 = vpop.f32.mrb[0].mxu0
      %v640 = vpop.f32.mrb[0].mxu0
      %v641 = vadd.f32 %v586, %v640
      %v642 = vpop.f32.mrb[0].mxu0
      %643 = vmatprep.mubr.bf16.mxu0 0
      %644 = vmatmul.mubr.bf16.gmra.mrb[0].mxu0 %v297
      %v645 = vpop.f32.mrb[0].mxu0
      %v646 = vadd.f32 %v586, %v645
      %v647 = vpop.f32.mrb[0].mxu0
      %v648 = vpop.f32.mrb[0].mxu0
      %v649 = vadd.f32 %v586, %v648
      %v650 = vpop.f32.mrb[0].mxu0
      %651 = vdwg.mxu0
      %vm652 = vcmp.gt.f32.partialorder %v622, 0.0
      %vm653 = vcmp.gt.f32.partialorder %v625, 0.0
      %vm654 = vcmp.gt.f32.partialorder %v630, 0.0
      %vm655 = vcmp.gt.f32.partialorder %v633, 0.0
      %vm656 = vcmp.gt.f32.partialorder %v638, 0.0
      %vm657 = vcmp.gt.f32.partialorder %v641, 0.0
      %vm658 = vcmp.gt.f32.partialorder %v646, 0.0
      %vm659 = vcmp.gt.f32.partialorder %v649, 0.0
      %v660 = vmul.f32 %v622, 0.01
      %v661 = vmul.f32 %v625, 0.01
      %v662 = vmul.f32 %v630, 0.01
      %v663 = vmul.f32 %v633, 0.01
      %v664 = vmul.f32 %v638, 0.01
      %v665 = vmul.f32 %v641, 0.01
      %v666 = vmul.f32 %v646, 0.01
      %v667 = vmul.f32 %v649, 0.01
      %v668 = vsel %vm652, %v622, %v660
      %v669 = vsel %vm653, %v625, %v661
      %v670 = vsel %vm654, %v630, %v662
      %v671 = vsel %vm655, %v633, %v663
      %v672 = vsel %vm656, %v638, %v664
      %v673 = vsel %vm657, %v641, %v665
      %v674 = vsel %vm658, %v646, %v666
      %v675 = vsel %vm659, %v649, %v667
      %v676 = vpack.c.bf16 %v669, %v668
      %v677 = vpack.c.bf16 %v671, %v670
      %v678 = vpack.c.bf16 %v673, %v672
      %v679 = vpack.c.bf16 %v675, %v674
      %v680 = vld [vmem:[%s3 + $0x18] sm:$0x3]
      %v682 = vsel %vm374, %v676, 0
      %v685 = vsel %vm374, %v677, 0
      %v688 = vsel %vm374, %v678, 0
      %v691 = vsel %vm374, %v679, 0
      %v694 = vsel %vm387, %v680, 0
      %696 = vmatprep.subr.bf16.mxu0 0
      %697 = vmatpush1.bf16.msra.mxu0 %v694
      %698 = vmatprep.subr.bf16.mxu0 0
      %699 = vmatpush1.bf16.msra.mxu0 0
      %700 = vmatprep.subr.bf16.mxu0 0
      %701 = vmatpush1.bf16.msra.mxu0 0
      %702 = vmatprep.subr.bf16.mxu0 0
      %703 = vmatpush1.bf16.msra.mxu0 0
      %704 = vmatprep.subr.bf16.mxu0 0
      %705 = vmatpush1.bf16.msra.mxu0 0
      %706 = vmatprep.subr.bf16.mxu0 0
      %707 = vmatpush1.bf16.msra.mxu0 0
      %708 = vmatprep.subr.bf16.mxu0 0
      %709 = vmatpush1.bf16.msra.mxu0 0
      %710 = vmatprep.subr.bf16.mxu0 0
      %711 = vmatpush1.bf16.msra.mxu0 0
      %712 = vmatprep.subr.bf16.mxu0 0
      %713 = vmatpush1.bf16.msra.mxu0 0
      %714 = vmatprep.subr.bf16.mxu0 0
      %715 = vmatpush1.bf16.msra.mxu0 0
      %716 = vmatprep.subr.bf16.mxu0 0
      %717 = vmatpush1.bf16.msra.mxu0 0
      %718 = vmatprep.subr.bf16.mxu0 0
      %719 = vmatpush1.bf16.msra.mxu0 0
      %720 = vmatprep.subr.bf16.mxu0 0
      %721 = vmatpush1.bf16.msra.mxu0 0
      %722 = vmatprep.subr.bf16.mxu0 0
      %723 = vmatpush1.bf16.msra.mxu0 0
      %724 = vmatprep.subr.bf16.mxu0 0
      %725 = vmatpush1.bf16.msra.mxu0 0
      %726 = vmatprep.subr.bf16.mxu0 0
      %727 = vmatpush1.bf16.msra.mxu0 0
      %728 = vmatprep.mubr.bf16.mxu0 0
      %729 = vmatmul.mubr.bf16.gmra.mrb[0].mxu0 %v682
      %v730 = vpop.f32.mrb[0].mxu0
      %v731 = vadd.f32 0.0, %v730
      %v732 = vpop.f32.mrb[0].mxu0
      %v733 = vpop.f32.mrb[0].mxu0
      %v734 = vadd.f32 0.0, %v733
      %v735 = vpop.f32.mrb[0].mxu0
      %736 = vmatprep.mubr.bf16.mxu0 0
      %737 = vmatmul.mubr.bf16.gmra.mrb[0].mxu0 %v685
      %v738 = vpop.f32.mrb[0].mxu0
      %v739 = vadd.f32 0.0, %v738
      %v740 = vpop.f32.mrb[0].mxu0
      %v741 = vpop.f32.mrb[0].mxu0
      %v742 = vadd.f32 0.0, %v741
      %v743 = vpop.f32.mrb[0].mxu0
      %744 = vmatprep.mubr.bf16.mxu0 0
      %745 = vmatmul.mubr.bf16.gmra.mrb[0].mxu0 %v688
      %v746 = vpop.f32.mrb[0].mxu0
      %v747 = vadd.f32 0.0, %v746
      %v748 = vpop.f32.mrb[0].mxu0
      %v749 = vpop.f32.mrb[0].mxu0
      %v750 = vadd.f32 0.0, %v749
      %v751 = vpop.f32.mrb[0].mxu0
      %752 = vmatprep.mubr.bf16.mxu0 0
      %753 = vmatmul.mubr.bf16.gmra.mrb[0].mxu0 %v691
      %v754 = vpop.f32.mrb[0].mxu0
      %v755 = vadd.f32 0.0, %v754
      %v756 = vpop.f32.mrb[0].mxu0
      %v757 = vpop.f32.mrb[0].mxu0
      %v758 = vadd.f32 0.0, %v757
      %v759 = vpop.f32.mrb[0].mxu0
      %760 = vdwg.mxu0
      %v761 = vpack.c.bf16 %v734, %v731
      %v762 = vpack.c.bf16 %v742, %v739
      %v763 = vpack.c.bf16 %v750, %v747
      %v764 = vpack.c.bf16 %v758, %v755
      %v765 = vld [vmem:[%s4 + $0x10] sm:$0x1]
      %v766 = vlaneseq
      %v767 = vshrl.u32 %v766, 7
      %v768 = vsub.s32 0, %v767
      %v769 = vrot.slane %v765, %v768
      %770 = vmatprep.subr.bf16.mxu0 0
      %771 = vmatpush1.bf16.msra.mxu0 %v761
      %772 = vmatprep.subr.bf16.mxu0 0
      %773 = vmatpush1.bf16.msra.mxu0 %v762
      %774 = vmatprep.subr.bf16.mxu0 0
      %775 = vmatpush1.bf16.msra.mxu0 %v763
      %776 = vmatprep.subr.bf16.mxu0 0
      %777 = vmatpush1.bf16.msra.mxu0 %v764
      %778 = vmatprep.subr.bf16.mxu0 0
      %779 = vmatpush1.bf16.msra.mxu0 0
      %780 = vmatprep.subr.bf16.mxu0 0
      %781 = vmatpush1.bf16.msra.mxu0 0
      %782 = vmatprep.subr.bf16.mxu0 0
      %783 = vmatpush1.bf16.msra.mxu0 0
      %784 = vmatprep.subr.bf16.mxu0 0
      %785 = vmatpush1.bf16.msra.mxu0 0
      %786 = vmatprep.subr.bf16.mxu0 0
      %787 = vmatpush1.bf16.msra.mxu0 0
      %788 = vmatprep.subr.bf16.mxu0 0
      %789 = vmatpush1.bf16.msra.mxu0 0
      %790 = vmatprep.subr.bf16.mxu0 0
      %791 = vmatpush1.bf16.msra.mxu0 0
      %792 = vmatprep.subr.bf16.mxu0 0
      %793 = vmatpush1.bf16.msra.mxu0 0
      %794 = vmatprep.subr.bf16.mxu0 0
      %795 = vmatpush1.bf16.msra.mxu0 0
      %796 = vmatprep.subr.bf16.mxu0 0
      %797 = vmatpush1.bf16.msra.mxu0 0
      %798 = vmatprep.subr.bf16.mxu0 0
      %799 = vmatpush1.bf16.msra.mxu0 0
      %800 = vmatprep.subr.bf16.mxu0 0
      %801 = vmatpush1.bf16.msra.mxu0 0
      %802 = vmatprep.mubr.bf16.mxu0 0
      %803 = vmatmul.mubr.bf16.gmra.mrb[0].mxu0 %v288
      %v804 = vpop.f32.mrb[0].mxu0
      %v805 = vadd.f32 %v769, %v804
      %v806 = vpop.f32.mrb[0].mxu0
      %v807 = vpop.f32.mrb[0].mxu0
      %v808 = vadd.f32 %v769, %v807
      %v809 = vpop.f32.mrb[0].mxu0
      %810 = vmatprep.mubr.bf16.mxu0 0
      %811 = vmatmul.mubr.bf16.gmra.mrb[0].mxu0 %v291
      %v812 = vpop.f32.mrb[0].mxu0
      %v813 = vadd.f32 %v769, %v812
      %v814 = vpop.f32.mrb[0].mxu0
      %v815 = vpop.f32.mrb[0].mxu0
      %v816 = vadd.f32 %v769, %v815
      %v817 = vpop.f32.mrb[0].mxu0
      %818 = vmatprep.mubr.bf16.mxu0 0
      %819 = vmatmul.mubr.bf16.gmra.mrb[0].mxu0 %v294
      %v820 = vpop.f32.mrb[0].mxu0
      %v821 = vadd.f32 %v769, %v820
      %v822 = vpop.f32.mrb[0].mxu0
      %v823 = vpop.f32.mrb[0].mxu0
      %v824 = vadd.f32 %v769, %v823
      %v825 = vpop.f32.mrb[0].mxu0
      %826 = vmatprep.mubr.bf16.mxu0 0
      %827 = vmatmul.mubr.bf16.gmra.mrb[0].mxu0 %v297
      %v828 = vpop.f32.mrb[0].mxu0
      %v829 = vadd.f32 %v769, %v828
      %v830 = vpop.f32.mrb[0].mxu0
      %v831 = vpop.f32.mrb[0].mxu0
      %v832 = vadd.f32 %v769, %v831
      %v833 = vpop.f32.mrb[0].mxu0
      %834 = vdwg.mxu0
      %vm835 = vcmp.gt.f32.partialorder %v805, 0.0
      %vm836 = vcmp.gt.f32.partialorder %v808, 0.0
      %vm837 = vcmp.gt.f32.partialorder %v813, 0.0
      %vm838 = vcmp.gt.f32.partialorder %v816, 0.0
      %vm839 = vcmp.gt.f32.partialorder %v821, 0.0
      %vm840 = vcmp.gt.f32.partialorder %v824, 0.0
      %vm841 = vcmp.gt.f32.partialorder %v829, 0.0
      %vm842 = vcmp.gt.f32.partialorder %v832, 0.0
      %v843 = vmul.f32 %v805, 0.01
      %v844 = vmul.f32 %v808, 0.01
      %v845 = vmul.f32 %v813, 0.01
      %v846 = vmul.f32 %v816, 0.01
      %v847 = vmul.f32 %v821, 0.01
      %v848 = vmul.f32 %v824, 0.01
      %v849 = vmul.f32 %v829, 0.01
      %v850 = vmul.f32 %v832, 0.01
      %v851 = vsel %vm835, %v805, %v843
      %v852 = vsel %vm836, %v808, %v844
      %v853 = vsel %vm837, %v813, %v845
      %v854 = vsel %vm838, %v816, %v846
      %v855 = vsel %vm839, %v821, %v847
      %v856 = vsel %vm840, %v824, %v848
      %v857 = vsel %vm841, %v829, %v849
      %v858 = vsel %vm842, %v832, %v850
      %v859 = vld [vmem:[%s4 + $0x20] sm:$0x1]
      %v860 = vlaneseq
      %v861 = vshrl.u32 %v860, 7
      %v862 = vsub.s32 0, %v861
      %v863 = vrot.slane %v859, %v862
      %v864 = vmul.f32 %v851, %v863
      %v865 = vmul.f32 %v852, %v863
      %v866 = vmul.f32 %v853, %v863
      %v867 = vmul.f32 %v854, %v863
      %v868 = vmul.f32 %v855, %v863
      %v869 = vmul.f32 %v856, %v863
      %v870 = vmul.f32 %v857, %v863
      %v871 = vmul.f32 %v858, %v863
      %880 = vrot.lane.b32.xlu0 %v864, 127
      %v881 = vpop.permute.xlu0 %880
      %882 = vrot.lane.b32.xlu0 %v865, 127
      %v883 = vpop.permute.xlu0 %882
      %884 = vrot.lane.b32.xlu0 %v866, 127
      %v885 = vpop.permute.xlu0 %884
      %886 = vrot.lane.b32.xlu0 %v867, 127
      %v887 = vpop.permute.xlu0 %886
      %888 = vrot.lane.b32.xlu0 %v868, 127
      %v889 = vpop.permute.xlu0 %888
      %890 = vrot.lane.b32.xlu0 %v869, 127
      %v891 = vpop.permute.xlu0 %890
      %892 = vrot.lane.b32.xlu0 %v870, 127
      %v893 = vpop.permute.xlu0 %892
      %894 = vrot.lane.b32.xlu0 %v871, 127
      %v895 = vpop.permute.xlu0 %894
      %v904 = vadd.f32 %v864, %v881
      %v905 = vadd.f32 %v865, %v883
      %v906 = vadd.f32 %v866, %v885
      %v907 = vadd.f32 %v867, %v887
      %v908 = vadd.f32 %v868, %v889
      %v909 = vadd.f32 %v869, %v891
      %v910 = vadd.f32 %v870, %v893
      %v911 = vadd.f32 %v871, %v895
      %v912 = vpack.c.bf16 %v905, %v904
      %v913 = vpack.c.bf16 %v907, %v906
      %v914 = vpack.c.bf16 %v909, %v908
      %v915 = vpack.c.bf16 %v911, %v910
      %v916 = vld [vmem:[%s4 + $0x18] sm:$0x1]
      %v917 = vlaneseq
      %v918 = vshrl.u32 %v917, 7
      %v919 = vsub.s32 0, %v918
      %v920 = vrot.slane %v916, %v919
      %921 = vmatprep.subr.bf16.mxu0 0
      %922 = vmatpush1.bf16.msra.mxu0 %v912
      %923 = vmatprep.subr.bf16.mxu0 0
      %924 = vmatpush1.bf16.msra.mxu0 %v913
      %925 = vmatprep.subr.bf16.mxu0 0
      %926 = vmatpush1.bf16.msra.mxu0 %v914
      %927 = vmatprep.subr.bf16.mxu0 0
      %928 = vmatpush1.bf16.msra.mxu0 %v915
      %929 = vmatprep.subr.bf16.mxu0 0
      %930 = vmatpush1.bf16.msra.mxu0 0
      %931 = vmatprep.subr.bf16.mxu0 0
      %932 = vmatpush1.bf16.msra.mxu0 0
      %933 = vmatprep.subr.bf16.mxu0 0
      %934 = vmatpush1.bf16.msra.mxu0 0
      %935 = vmatprep.subr.bf16.mxu0 0
      %936 = vmatpush1.bf16.msra.mxu0 0
      %937 = vmatprep.subr.bf16.mxu0 0
      %938 = vmatpush1.bf16.msra.mxu0 0
      %939 = vmatprep.subr.bf16.mxu0 0
      %940 = vmatpush1.bf16.msra.mxu0 0
      %941 = vmatprep.subr.bf16.mxu0 0
      %942 = vmatpush1.bf16.msra.mxu0 0
      %943 = vmatprep.subr.bf16.mxu0 0
      %944 = vmatpush1.bf16.msra.mxu0 0
      %945 = vmatprep.subr.bf16.mxu0 0
      %946 = vmatpush1.bf16.msra.mxu0 0
      %947 = vmatprep.subr.bf16.mxu0 0
      %948 = vmatpush1.bf16.msra.mxu0 0
      %949 = vmatprep.subr.bf16.mxu0 0
      %950 = vmatpush1.bf16.msra.mxu0 0
      %951 = vmatprep.subr.bf16.mxu0 0
      %952 = vmatpush1.bf16.msra.mxu0 0
      %953 = vmatprep.mubr.bf16.mxu0 0
      %954 = vmatmul.mubr.bf16.gmra.mrb[0].mxu0 %v288
      %v955 = vpop.f32.mrb[0].mxu0
      %v956 = vadd.f32 %v920, %v955
      %v957 = vpop.f32.mrb[0].mxu0
      %v958 = vpop.f32.mrb[0].mxu0
      %v959 = vadd.f32 %v920, %v958
      %v960 = vpop.f32.mrb[0].mxu0
      %961 = vmatprep.mubr.bf16.mxu0 0
      %962 = vmatmul.mubr.bf16.gmra.mrb[0].mxu0 %v291
      %v963 = vpop.f32.mrb[0].mxu0
      %v964 = vadd.f32 %v920, %v963
      %v965 = vpop.f32.mrb[0].mxu0
      %v966 = vpop.f32.mrb[0].mxu0
      %v967 = vadd.f32 %v920, %v966
      %v968 = vpop.f32.mrb[0].mxu0
      %969 = vmatprep.mubr.bf16.mxu0 0
      %970 = vmatmul.mubr.bf16.gmra.mrb[0].mxu0 %v294
      %v971 = vpop.f32.mrb[0].mxu0
      %v972 = vadd.f32 %v920, %v971
      %v973 = vpop.f32.mrb[0].mxu0
      %v974 = vpop.f32.mrb[0].mxu0
      %v975 = vadd.f32 %v920, %v974
      %v976 = vpop.f32.mrb[0].mxu0
      %977 = vmatprep.mubr.bf16.mxu0 0
      %978 = vmatmul.mubr.bf16.gmra.mrb[0].mxu0 %v297
      %v979 = vpop.f32.mrb[0].mxu0
      %v980 = vadd.f32 %v920, %v979
      %v981 = vpop.f32.mrb[0].mxu0
      %v982 = vpop.f32.mrb[0].mxu0
      %v983 = vadd.f32 %v920, %v982
      %v984 = vpop.f32.mrb[0].mxu0
      %985 = vdwg.mxu0
      %vm986 = vcmp.gt.f32.partialorder %v956, 0.0
      %vm987 = vcmp.gt.f32.partialorder %v959, 0.0
      %vm988 = vcmp.gt.f32.partialorder %v964, 0.0
      %vm989 = vcmp.gt.f32.partialorder %v967, 0.0
      %vm990 = vcmp.gt.f32.partialorder %v972, 0.0
      %vm991 = vcmp.gt.f32.partialorder %v975, 0.0
      %vm992 = vcmp.gt.f32.partialorder %v980, 0.0
      %vm993 = vcmp.gt.f32.partialorder %v983, 0.0
      %v994 = vmul.f32 %v956, 0.01
      %v995 = vmul.f32 %v959, 0.01
      %v996 = vmul.f32 %v964, 0.01
      %v997 = vmul.f32 %v967, 0.01
      %v998 = vmul.f32 %v972, 0.01
      %v999 = vmul.f32 %v975, 0.01
      %v1000 = vmul.f32 %v980, 0.01
      %v1001 = vmul.f32 %v983, 0.01
      %v1002 = vsel %vm986, %v956, %v994
      %v1003 = vsel %vm987, %v959, %v995
      %v1004 = vsel %vm988, %v964, %v996
      %v1005 = vsel %vm989, %v967, %v997
      %v1006 = vsel %vm990, %v972, %v998
      %v1007 = vsel %vm991, %v975, %v999
      %v1008 = vsel %vm992, %v980, %v1000
      %v1009 = vsel %vm993, %v983, %v1001
      %v1010 = vld [vmem:[%s2] sm:$0xf]
      %v1011 = vpack.c.bf16 %v1003, %v1002
      %v1012 = vpack.c.bf16 %v1005, %v1004
      %v1013 = vpack.c.bf16 %v1007, %v1006
      %v1014 = vpack.c.bf16 %v1009, %v1008
      %v1016 = vsel %vm286, %v1010, 0
      %1018 = vmatprep.subr.bf16.mxu0 0
      %1019 = vmatpush1.bf16.msra.mxu0 %v1011
      %1020 = vmatprep.subr.bf16.mxu0 0
      %1021 = vmatpush1.bf16.msra.mxu0 %v1012
      %1022 = vmatprep.subr.bf16.mxu0 0
      %1023 = vmatpush1.bf16.msra.mxu0 %v1013
      %1024 = vmatprep.subr.bf16.mxu0 0
      %1025 = vmatpush1.bf16.msra.mxu0 %v1014
      %1026 = vmatprep.subr.bf16.mxu0 0
      %1027 = vmatpush1.bf16.msra.mxu0 0
      %1028 = vmatprep.subr.bf16.mxu0 0
      %1029 = vmatpush1.bf16.msra.mxu0 0
      %1030 = vmatprep.subr.bf16.mxu0 0
      %1031 = vmatpush1.bf16.msra.mxu0 0
      %1032 = vmatprep.subr.bf16.mxu0 0
      %1033 = vmatpush1.bf16.msra.mxu0 0
      %1034 = vmatprep.subr.bf16.mxu0 0
      %1035 = vmatpush1.bf16.msra.mxu0 0
      %1036 = vmatprep.subr.bf16.mxu0 0
      %1037 = vmatpush1.bf16.msra.mxu0 0
      %1038 = vmatprep.subr.bf16.mxu0 0
      %1039 = vmatpush1.bf16.msra.mxu0 0
      %1040 = vmatprep.subr.bf16.mxu0 0
      %1041 = vmatpush1.bf16.msra.mxu0 0
      %1042 = vmatprep.subr.bf16.mxu0 0
      %1043 = vmatpush1.bf16.msra.mxu0 0
      %1044 = vmatprep.subr.bf16.mxu0 0
      %1045 = vmatpush1.bf16.msra.mxu0 0
      %1046 = vmatprep.subr.bf16.mxu0 0
      %1047 = vmatpush1.bf16.msra.mxu0 0
      %1048 = vmatprep.subr.bf16.mxu0 0
      %1049 = vmatpush1.bf16.msra.mxu0 0
      %1050 = vmatprep.mubr.bf16.mxu0 0
      %1051 = vmatmul.mubr.bf16.gmra.mrb[0].mxu0 %v1016
      %v1052 = vpop.f32.mrb[0].mxu0
      %v1053 = vadd.f32 0.0, %v1052
      %v1054 = vpop.f32.mrb[0].mxu0
      %v1055 = vpop.f32.mrb[0].mxu0
      %v1056 = vpop.f32.mrb[0].mxu0
      %1057 = vdwg.mxu0
      %v1058 = vld [vmem:[%s4 + $0x28] sm:$0x1]
      %1060 = vset.pattern.permute.xlu0 0
      %1061 = vperm.xlu0 %1060, %v1053
      %v1062 = vpop.permute.xlu0 %1061
      %v1064 = vlaneseq
      %v1065 = vshrl.u32 %v1064, 7
      %v1066 = vsub.s32 0, %v1065
      %v1067 = vrot.slane %v1058, %v1066
      %v1068 = vmul.f32 %v1062, %v1067
      %v1069 = vld [vmem:[%s4 + $0x30] sm:$0x1]
      %v1070 = vlaneseq
      %v1071 = vshrl.u32 %v1070, 7
      %v1072 = vsub.s32 0, %v1071
      %v1073 = vrot.slane %v1069, %v1072
      %v1074 = vadd.f32 %v1068, %v1073
      %v1075 = vand.u32 2147483647, %v1074
      %v1076 = vsub.f32 0.0, %v1075
      %v1077 = vmul.f32 %v1076, 1.442695
      %v1078 = vpow.pop %v1077
      %v1079 = vadd.f32 %v1078, 1.0
      %v1080 = vrcp.pop %v1079
      %vm1081 = vcmp.ge.f32.partialorder %v1074, 0.0
      %v1082 = vmul.f32 %v1078, %v1080
      %v1083 = vsel %vm1081, %v1080, %v1082
      %v1084 = vmin.f32 %v1083, 1.0
      %1085 = vst [vmem:[%s224] sm:$0xff] %v1084
      %p1086 = scmp.lt.s32.totalorder %s16, 1
      %s1087 = scalar_select %p1086, %s16, 1
      %s1088 = smul.addr %s1087, 8
      %s1089 = scalar_lea.vmem %s5, %s1088
      // Predicated region
      $region41: #{gcn_classifier_forward.1} parent=39 // pred_check
        %p1090 = pneg %p144
      $region42: #{gcn_classifier_forward.1} parent=39 // pred_check_branch
        %1092 = sbr.rel (%p1090) target = $region44
      $region43: #{gcn_classifier_forward.1} parent=39 // pred_region
        _
      $region44: #{gcn_classifier_forward.1} parent=39 // pred_fallthru
        _
    $region40: #{gcn_classifier_forward.1} parent=5 // pred_fallthru
      _
    %p1093 = scmp.le.s32.totalorder 2, %s11
    // Predicated region
    $region45: #{gcn_classifier_forward.1} parent=5 // pred_check
      %p1094 = pneg %p1093
    $region46: #{gcn_classifier_forward.1} parent=5 // pred_check_branch
      %1096 = sbr.rel (%p1094) target = $region48
    $region47: #{gcn_classifier_forward.1} parent=5 // pred_region
      %s1097 = ssub.s32 %s11, 2
      // Predicated region
      $region49: #{gcn_classifier_forward.1} parent=47 // pred_check
        %p1098 = pneg %p150
      $region50: #{gcn_classifier_forward.1} parent=47 // pred_check_branch
        %1100 = sbr.rel (%p1098) target = $region52
      $region51: #{gcn_classifier_forward.1} parent=47 // pred_region
        %p1101 = scmp.lt.s32.totalorder %s17, 1
        %s1102 = scalar_select %p1101, %s17, 1
        %s1103 = smul.addr %s1102, 8
        %s1104 = scalar_lea.vmem %s5, %s1103
      $region52: #{gcn_classifier_forward.1} parent=47 // pred_fallthru
        _
    $region48: #{gcn_classifier_forward.1} parent=5 // pred_fallthru
      _
  $region6: #{gcn_classifier_forward.1} parent=0 // loop_footer
    %s15 = sadd.s32 1, %s11
  $region7: #{gcn_classifier_forward.1} parent=0 // loop_footer_branch
    %10 = sbr.rel target = $region3
  $region8: #{gcn_classifier_forward.1} parent=0 // loop_exit
    _

</llo_original>
